<compile_context>
chip_gen: v5e
topology: v5e:2x2
jax: 0.10.0
libtpu: 0.0.40
codegen_flags: <defaults>
</compile_context>

<pallas_src>
import math

import jax
import jax.numpy as jnp
from jax.experimental import pallas as pl
from jax.experimental.pallas import tpu as pltpu


def _round_up(v, m):
    return ((v + m - 1) // m) * m


def _tile_plan(n, tm, tk):
    """Clamp tile sizes to the graph size and pick a non-over-padded n_pad."""
    assert tm % 128 == 0 and tk % 128 == 0, "tiles must be multiples of 128"
    n_min = _round_up(n, 128)
    tm = min(tm, n_min)
    tk = min(tk, n_min)
    n_pad = _round_up(n, tm)          # pad rows only to the row-tile multiple
    if n_pad % tk:                    # make tk divide n_pad (no lcm over-pad)
        tk = math.gcd(tk, n_pad)
    # v7x megacore: prefer >= 2 row tiles so both TensorCores get work.
    if n_pad == tm and tm >= 256 and (tm // 2) % 128 == 0:
        tm //= 2
    return tm, tk, n_pad


def prepare_adj(adj, n, *, tm=512, tk=512, matmul_dtype=jnp.bfloat16):
    """Pad + cast the (N, N) adjacency ONCE per model; reuse across layers."""
    assert adj.shape == (n, n)
    _, _, n_pad = _tile_plan(n, tm, tk)
    return jnp.pad(adj, ((0, n_pad - n), (0, n_pad - n))).astype(matmul_dtype)


# ---------------------------------------------------------------------------
# Fused kernel: out = relu(adj @ (x @ W) + (y + b)), K-tiled.
# support slice is recomputed per grid step from the x K-slice and resident W.
# ---------------------------------------------------------------------------
def _resgcn_kernel_f32out(adj_ref, x_ref, w_ref, yb_ref, o_ref):
    """f32 output: accumulate directly into o_ref (resident across k)."""
    k = pl.program_id(1)

    @pl.when(k == 0)
    def _():
        o_ref[...] = jnp.zeros_like(o_ref)

    sup = jnp.dot(x_ref[...], w_ref[...], preferred_element_type=jnp.float32)
    o_ref[...] += jnp.dot(adj_ref[...], sup.astype(adj_ref.dtype),
                          preferred_element_type=jnp.float32)

    @pl.when(k == pl.num_programs(1) - 1)
    def _():
        o_ref[...] = jnp.maximum(o_ref[...] + yb_ref[...], 0.0)
    # TODO(synk): dropout is identity for p=0.0 / eval mode, so it is omitted;
    # a training-mode version would use pltpu.prng_seed + prng_random_bits.


def _resgcn_kernel_scratch(adj_ref, x_ref, w_ref, yb_ref, o_ref, acc_ref):
    """Generic output dtype: f32 VMEM accumulator, cast in the epilogue."""
    k = pl.program_id(1)

    @pl.when(k == 0)
    def _():
        acc_ref[...] = jnp.zeros_like(acc_ref)

    sup = jnp.dot(x_ref[...], w_ref[...], preferred_element_type=jnp.float32)
    acc_ref[...] += jnp.dot(adj_ref[...], sup.astype(adj_ref.dtype),
                            preferred_element_type=jnp.float32)

    @pl.when(k == pl.num_programs(1) - 1)
    def _():
        out = acc_ref[...] + yb_ref[...].astype(jnp.float32)
        o_ref[...] = jnp.maximum(out, 0.0).astype(o_ref.dtype)


def resgcn_forward(x, y, adj, weight, bias, *, tm=512, tk=512,
                   matmul_dtype=jnp.bfloat16, adj_buffers=2):
    N, d_in = x.shape
    d_out = weight.shape[1]
    assert y.shape == (N, d_out)

    mm_dtype = jnp.dtype(matmul_dtype)
    out_dtype = y.dtype

    tm, tk, n_pad = _tile_plan(N, tm, tk)
    do_pad = _round_up(d_out, 128)    # lane-dense output / support layout

    # Accept a pre-padded / pre-cast adjacency (prepare_adj) so the O(N^2)
    # pad + cast happens once per model, not once per layer.
    if adj.shape == (n_pad, n_pad) and adj.dtype == mm_dtype:
        adj_p = adj
    else:
        assert adj.shape == (N, N)
        adj_p = jnp.pad(adj, ((0, n_pad - N), (0, n_pad - N))).astype(mm_dtype)

    x_p = jnp.pad(x, ((0, n_pad - N), (0, 0))).astype(mm_dtype)
    w_p = jnp.pad(weight, ((0, 0), (0, do_pad - d_out))).astype(mm_dtype)
    # Fold bias into the residual (single f32 epilogue operand).
    yb = (y + bias[None, :]).astype(jnp.float32)
    yb_p = jnp.pad(yb, ((0, n_pad - N), (0, do_pad - d_out)))

    grid = (n_pad // tm, n_pad // tk)
    itm = mm_dtype.itemsize
    out_itm = jnp.dtype(out_dtype).itemsize

    flops = (2 * n_pad * n_pad * do_pad                 # adj @ support
             + 2 * n_pad * d_in * do_pad * grid[0])     # fused support recompute
    bytes_accessed = (n_pad * n_pad * itm               # adj, streamed once
                      + n_pad * d_in * itm * grid[0]    # x K-slices per row tile
                      + d_in * do_pad * itm             # W (VMEM-resident)
                      + n_pad * do_pad * 4              # y + bias
                      + n_pad * do_pad * out_itm)       # output

    adj_spec = pl.BlockSpec((tm, tk), lambda i, k: (i, k))
    if adj_buffers != 2:
        # Deeper pipelining on the adj stream if DMA is still exposed.
        adj_spec = pl.BlockSpec((tm, tk), lambda i, k: (i, k),
                                pipeline_mode=pl.Buffered(adj_buffers))

    in_specs = [
        adj_spec,                                            # adj tile
        pl.BlockSpec((tk, d_in), lambda i, k: (k, 0)),       # x K-slice
        pl.BlockSpec((d_in, do_pad), lambda i, k: (0, 0)),   # W (resident)
        pl.BlockSpec((tm, do_pad), lambda i, k: (i, 0)),     # y + bias
    ]
    out_spec = pl.BlockSpec((tm, do_pad), lambda i, k: (i, 0))

    if out_dtype == jnp.float32:
        kernel = _resgcn_kernel_f32out
        scratch = []
    else:
        kernel = _resgcn_kernel_scratch
        scratch = [pltpu.VMEM((tm, do_pad), jnp.float32)]

    out_p = pl.pallas_call(
        kernel,
        out_shape=jax.ShapeDtypeStruct((n_pad, do_pad), out_dtype),
        grid_spec=pltpu.PrefetchScalarGridSpec(
            num_scalar_prefetch=0,
            grid=grid,
            in_specs=in_specs,
            out_specs=out_spec,
            scratch_shapes=scratch,
        ),
        compiler_params=pltpu.CompilerParams(
            dimension_semantics=("parallel", "arbitrary"),
            vmem_limit_bytes=32 * 1024 * 1024),
        cost_estimate=pl.CostEstimate(
            flops=flops, transcendentals=0, bytes_accessed=bytes_accessed),
    )(adj_p, x_p, w_p, yb_p)

    return out_p[:N, :d_out]


def resgcn_reference(x, y, adj, weight, bias):
    support = x @ weight
    gc_out = adj @ support + bias[None, :]
    return jnp.maximum(gc_out + y, 0.0)


if __name__ == "__main__":
    key = jax.random.PRNGKey(0)
    k_x, k_y, k_adj, k_w, k_b = jax.random.split(key, 5)

    # Small graph: N nodes, d_in input features, d_out output features.
    N, d_in, d_out = 64, 32, 32

    x = jax.random.normal(k_x, (N, d_in), dtype=jnp.float32)
    y = jax.random.normal(k_y, (N, d_out), dtype=jnp.float32)
    # Row-normalized dense adjacency.
    a = jax.random.uniform(k_adj, (N, N), dtype=jnp.float32)
    adj = a / jnp.sum(a, axis=-1, keepdims=True)

    # GraphConvolution.reset_parameters: uniform(-stdv, stdv), stdv = 1/sqrt(d_out)
    stdv = 1.0 / math.sqrt(d_out)
    weight = jax.random.uniform(k_w, (d_in, d_out), dtype=jnp.float32,
                                minval=-stdv, maxval=stdv)
    bias = jax.random.uniform(k_b, (d_out,), dtype=jnp.float32,
                              minval=-stdv, maxval=stdv)

    ref = resgcn_reference(x, y, adj, weight, bias)

    # f32 MXU path (exactness check), with per-model adj preparation.
    adj_f32 = prepare_adj(adj, N, matmul_dtype=jnp.float32)
    out = jax.block_until_ready(
        resgcn_forward(x, y, adj_f32, weight, bias, matmul_dtype=jnp.float32))
    assert out.shape == (N, d_out)
    assert jnp.allclose(out, ref, atol=1e-4, rtol=1e-4), "f32 mismatch vs reference"

    # Default bf16 matmul-input path (f32 accumulate + epilogue); prepared adj
    # would be reused across every layer of a stacked ResGCN.
    adj_bf16 = prepare_adj(adj, N)
    out_bf16 = jax.block_until_ready(resgcn_forward(x, y, adj_bf16, weight, bias))
    assert out_bf16.shape == (N, d_out)
    assert jnp.allclose(out_bf16, ref, atol=1e-1, rtol=1e-1), "bf16 mismatch vs reference"

    # Unprepared-adj fallback path (pad + cast done inside the wrapper).
    out_raw = jax.block_until_ready(resgcn_forward(x, y, adj, weight, bias))
    assert jnp.allclose(out_raw, ref, atol=1e-1, rtol=1e-1), "fallback mismatch"

    print("KERNEL_OK")
</pallas_src>

<mosaic_0001>
module attributes {stable_mosaic.version = 11 : i64} {
  func.func @_resgcn_kernel_f32out(%arg0: i32, %arg1: i32, %arg2: memref<128x128xf32, #tpu.memory_space<vmem>>, %arg3: memref<128x32xf32, #tpu.memory_space<vmem>>, %arg4: memref<32x128xf32, #tpu.memory_space<vmem>>, %arg5: memref<128x128xf32, #tpu.memory_space<vmem>>, %arg6: memref<128x128xf32, #tpu.memory_space<vmem>>) attributes {dimension_semantics = [#tpu.dimension_semantics<parallel>, #tpu.dimension_semantics<arbitrary>], iteration_bounds = array<i64: 1, 1>, scalar_prefetch = 0 : i64, scratch_operands = 0 : i64, tpu.core_type = #tpu.core_type<tc>, window_params = [{transform_indices = @transform_0, window_bounds = array<i64: 128, 128>}, {transform_indices = @transform_1, window_bounds = array<i64: 128, 32>}, {pipeline_mode = #tpu.pipeline_mode<synchronous>, transform_indices = @transform_2, window_bounds = array<i64: 32, 128>}, {transform_indices = @transform_3, window_bounds = array<i64: 128, 128>}, {transform_indices = @transform_4, window_bounds = array<i64: 128, 128>}]} {
    %c0_i32 = arith.constant 0 : i32
    %0 = arith.cmpi eq, %arg1, %c0_i32 : i32
    %1 = arith.extui %0 : i1 to i32
    %c0_i32_0 = arith.constant 0 : i32
    %2 = arith.cmpi ne, %1, %c0_i32_0 : i32
    scf.if %2 {
      %cst_13 = arith.constant 0.000000e+00 : f32
      %14 = vector.broadcast %cst_13 : f32 to vector<128x128xf32>
      %c0_14 = arith.constant 0 : index
      %c0_15 = arith.constant 0 : index
      %15 = vector.load %arg6[%c0_14, %c0_15] : memref<128x128xf32, #tpu.memory_space<vmem>>, vector<128x128xf32>
      tpu.vector_store %arg6[%c0_14, %c0_15], %14 {strides = array<i32>} : memref<128x128xf32, #tpu.memory_space<vmem>>, vector<128x128xf32>,
    } else {
    }
    %c0 = arith.constant 0 : index
    %c0_1 = arith.constant 0 : index
    %3 = vector.load %arg3[%c0, %c0_1] : memref<128x32xf32, #tpu.memory_space<vmem>>, vector<128x32xf32>
    %c0_2 = arith.constant 0 : index
    %c0_3 = arith.constant 0 : index
    %4 = vector.load %arg4[%c0_2, %c0_3] : memref<32x128xf32, #tpu.memory_space<vmem>>, vector<32x128xf32>
    %cst = arith.constant dense<0.000000e+00> : vector<128x128xf32>
    %5 = tpu.matmul %3, %4, %cst {dimension_numbers = #tpu.dot_dimension_numbers<[1], [0], [0], [1], [0, 0, 1, 1], [], []>} : vector<128x32xf32>, vector<32x128xf32>, vector<128x128xf32> -> vector<128x128xf32>
    %c0_4 = arith.constant 0 : index
    %c0_5 = arith.constant 0 : index
    %6 = vector.load %arg6[%c0_4, %c0_5] : memref<128x128xf32, #tpu.memory_space<vmem>>, vector<128x128xf32>
    %c0_6 = arith.constant 0 : index
    %c0_7 = arith.constant 0 : index
    %7 = vector.load %arg2[%c0_6, %c0_7] : memref<128x128xf32, #tpu.memory_space<vmem>>, vector<128x128xf32>
    %cst_8 = arith.constant dense<0.000000e+00> : vector<128x128xf32>
    %8 = tpu.matmul %7, %5, %cst_8 {dimension_numbers = #tpu.dot_dimension_numbers<[1], [0], [0], [1], [0, 0, 1, 1], [], []>} : vector<128x128xf32>, vector<128x128xf32>, vector<128x128xf32> -> vector<128x128xf32>
    %9 = arith.addf %6, %8 : vector<128x128xf32>
    %c0_9 = arith.constant 0 : index
    %c0_10 = arith.constant 0 : index
    %10 = vector.load %arg6[%c0_9, %c0_10] : memref<128x128xf32, #tpu.memory_space<vmem>>, vector<128x128xf32>
    tpu.vector_store %arg6[%c0_9, %c0_10], %9 {strides = array<i32>} : memref<128x128xf32, #tpu.memory_space<vmem>>, vector<128x128xf32>,
    %c0_i32_11 = arith.constant 0 : i32
    %11 = arith.cmpi eq, %arg1, %c0_i32_11 : i32
    %12 = arith.extui %11 : i1 to i32
    %c0_i32_12 = arith.constant 0 : i32
    %13 = arith.cmpi ne, %12, %c0_i32_12 : i32
    scf.if %13 {
      %c0_13 = arith.constant 0 : index
      %c0_14 = arith.constant 0 : index
      %14 = vector.load %arg6[%c0_13, %c0_14] : memref<128x128xf32, #tpu.memory_space<vmem>>, vector<128x128xf32>
      %c0_15 = arith.constant 0 : index
      %c0_16 = arith.constant 0 : index
      %15 = vector.load %arg5[%c0_15, %c0_16] : memref<128x128xf32, #tpu.memory_space<vmem>>, vector<128x128xf32>
      %16 = arith.addf %14, %15 : vector<128x128xf32>
      %cst_17 = arith.constant 0.000000e+00 : f32
      %17 = vector.broadcast %cst_17 : f32 to vector<128x128xf32>
      %18 = arith.maximumf %16, %17 : vector<128x128xf32>
      %c0_18 = arith.constant 0 : index
      %c0_19 = arith.constant 0 : index
      %19 = vector.load %arg6[%c0_18, %c0_19] : memref<128x128xf32, #tpu.memory_space<vmem>>, vector<128x128xf32>
      tpu.vector_store %arg6[%c0_18, %c0_19], %18 {strides = array<i32>} : memref<128x128xf32, #tpu.memory_space<vmem>>, vector<128x128xf32>,
    } else {
    }
    return
  }
  func.func @transform_0(%arg0: i32, %arg1: i32) -> (i32, i32) {
    %c0_i32 = arith.constant 0 : i32
    return %arg0, %arg1 : i32, i32
  }
  func.func @transform_1(%arg0: i32, %arg1: i32) -> (i32, i32) {
    %c0_i32 = arith.constant 0 : i32
    %c0_i32_0 = arith.constant 0 : i32
    return %arg1, %c0_i32 : i32, i32
  }
  func.func @transform_2(%arg0: i32, %arg1: i32) -> (i32, i32) {
    %c0_i32 = arith.constant 0 : i32
    %c0_i32_0 = arith.constant 0 : i32
    %c0_i32_1 = arith.constant 0 : i32
    return %c0_i32, %c0_i32_0 : i32, i32
  }
  func.func @transform_3(%arg0: i32, %arg1: i32) -> (i32, i32) {
    %c0_i32 = arith.constant 0 : i32
    %c0_i32_0 = arith.constant 0 : i32
    return %arg0, %c0_i32 : i32, i32
  }
  func.func @transform_4(%arg0: i32, %arg1: i32) -> (i32, i32) {
    %c0_i32 = arith.constant 0 : i32
    %c0_i32_0 = arith.constant 0 : i32
    return %arg0, %c0_i32 : i32, i32
  }
}

</mosaic_0001>

<llo_original>
// kernel: tpu_custom_call.1
$region0: #{tpu_custom_call.1}
  #allocation0 [shape = 'u32[]', space=smem, size = 0x4, offset = 0x4, fixed_abs, tag = 'smem constant byte address 0x4 - core index']
  #allocation1 [shape = 'u32[72,128]{1,0:T(1,128)}', space=vmem, size = 0x9000, scoped, tag = 'internal scratch']
  %s0 = inlined_call_operand.vmem [shape: f32[128,128], index: 0, kind: input, shape index: {}]
  %s1 = inlined_call_operand.vmem [shape: f32[128,32], index: 1, kind: input, shape index: {}]
  %s2 = inlined_call_operand.vmem [shape: f32[32,128], index: 2, kind: input, shape index: {}]
  %s3 = inlined_call_operand.hbm [shape: f32[128,128], index: 3, kind: input, shape index: {}]
  %s4 = inlined_call_operand.hbm [shape: f32[128,128], index: 4, kind: output, shape index: {}]
  %s5 = sld [smem:[#allocation0]]
  $region38: #{tpu_custom_call.1} parent=0
    _
  %s7 = ssub.s32 1, %s5
  %s8 = scalar_select 0, %s7, %s5
  $region1: #{tpu_custom_call.1} parent=0
    #allocation2 [shape = 'u8[65536]{0}', space=vmem, size = 0x10000, scoped, tag = 'input window, operand 3, single buffered']
    #allocation3 [shape = 's32[1]{0}', space=sflag, size = 0x4, scoped, tag = 'scoped memory for tpu_custom_call.1']
    #allocation4 [shape = 's32[1]{0}', space=sflag, size = 0x4, scoped, tag = 'scoped memory for tpu_custom_call.1']
    #allocation5 [shape = 'u8[65536]{0}', space=vmem, size = 0x10000, scoped, tag = 'output window, operand 0, single buffered']
    %9 = vsyncpa [#allocation3], 0
    %10 = vsyncpa [#allocation4], 0
    // Predicated region
    $region2: #{tpu_custom_call.1} parent=1 // pred_check
      _
    $region3: #{tpu_custom_call.1} parent=1 // pred_check_branch
      %12 = sbr.rel (0) target = $region5
    $region4: #{tpu_custom_call.1} parent=1 // pred_region
      _
    $region5: #{tpu_custom_call.1} parent=1 // pred_fallthru
      _
    // Predicated region
    $region6: #{tpu_custom_call.1} parent=1 // pred_check
      _
    $region7: #{tpu_custom_call.1} parent=1 // pred_check_branch
      %14 = sbr.rel (0) target = $region9
    $region8: #{tpu_custom_call.1} parent=1 // pred_region
      _
    $region9: #{tpu_custom_call.1} parent=1 // pred_fallthru
      _
    // Predicated region
    $region10: #{tpu_custom_call.1} parent=1 // pred_check
      _
    $region11: #{tpu_custom_call.1} parent=1 // pred_check_branch
      %16 = sbr.rel (0) target = $region13
    $region12: #{tpu_custom_call.1} parent=1 // pred_region
      _
    $region13: #{tpu_custom_call.1} parent=1 // pred_fallthru
      _
    // Predicated region
    $region14: #{tpu_custom_call.1} parent=1 // pred_check
      _
    $region15: #{tpu_custom_call.1} parent=1 // pred_check_branch
      %18 = sbr.rel (0) target = $region17
    $region16: #{tpu_custom_call.1} parent=1 // pred_region
      %20 = vsyncadd [#allocation3], 0
      %s21 = sshll.u32 %s3, 4
      %s22 = int_to_ptr.hbm [resolvable:$true] %s21
      %s23 = sshll.u32 [#allocation2], 4
      %s24 = int_to_ptr.vmem [resolvable:$true] %s23
      %29 = dma.hbm_to_vmem [thread:$0]  %s22, 2048, %s24, [#allocation3], 128, 128, 8
    $region17: #{tpu_custom_call.1} parent=1 // pred_fallthru
      _
    // Predicated region
    $region18: #{tpu_custom_call.1} parent=1 // pred_check
      _
    $region19: #{tpu_custom_call.1} parent=1 // pred_check_branch
      %31 = sbr.rel (0) target = $region21
    $region20: #{tpu_custom_call.1} parent=1 // pred_region
      %33 = dma.done [#allocation3], 2048
    $region21: #{tpu_custom_call.1} parent=1 // pred_fallthru
      _
    %p34 = scmp.eq.s32.totalorder 0, 0
    // Predicated region
    $region22: #{tpu_custom_call.1} parent=1 // pred_check
      %p35 = pneg %p34
    $region23: #{tpu_custom_call.1} parent=1 // pred_check_branch
      %37 = sbr.rel (%p35) target = $region25
    $region24: #{tpu_custom_call.1} parent=1 // pred_region
      %38 = vst [vmem:[#allocation5] sm:$0xff] 0.0
      %39 = vst [vmem:[#allocation5 + $0x8] sm:$0xff] 0.0
      %40 = vst [vmem:[#allocation5 + $0x10] sm:$0xff] 0.0
      %41 = vst [vmem:[#allocation5 + $0x18] sm:$0xff] 0.0
      %42 = vst [vmem:[#allocation5 + $0x20] sm:$0xff] 0.0
      %43 = vst [vmem:[#allocation5 + $0x28] sm:$0xff] 0.0
      %44 = vst [vmem:[#allocation5 + $0x30] sm:$0xff] 0.0
      %45 = vst [vmem:[#allocation5 + $0x38] sm:$0xff] 0.0
      %46 = vst [vmem:[#allocation5 + $0x40] sm:$0xff] 0.0
      %47 = vst [vmem:[#allocation5 + $0x48] sm:$0xff] 0.0
      %48 = vst [vmem:[#allocation5 + $0x50] sm:$0xff] 0.0
      %49 = vst [vmem:[#allocation5 + $0x58] sm:$0xff] 0.0
      %50 = vst [vmem:[#allocation5 + $0x60] sm:$0xff] 0.0
      %51 = vst [vmem:[#allocation5 + $0x68] sm:$0xff] 0.0
      %52 = vst [vmem:[#allocation5 + $0x70] sm:$0xff] 0.0
      %53 = vst [vmem:[#allocation5 + $0x78] sm:$0xff] 0.0
    $region25: #{tpu_custom_call.1} parent=1 // pred_fallthru
      _
    %v54 = vld [vmem:[%s1] sm:$0xff]
    %v55 = vld [vmem:[%s1 + $0x8] sm:$0xff]
    %v56 = vld [vmem:[%s1 + $0x10] sm:$0xff]
    %v57 = vld [vmem:[%s1 + $0x18] sm:$0xff]
    %v58 = vld [vmem:[%s1 + $0x20] sm:$0xff]
    %v59 = vld [vmem:[%s1 + $0x28] sm:$0xff]
    %v60 = vld [vmem:[%s1 + $0x30] sm:$0xff]
    %v61 = vld [vmem:[%s1 + $0x38] sm:$0xff]
    %v62 = vld [vmem:[%s1 + $0x40] sm:$0xff]
    %v63 = vld [vmem:[%s1 + $0x48] sm:$0xff]
    %v64 = vld [vmem:[%s1 + $0x50] sm:$0xff]
    %v65 = vld [vmem:[%s1 + $0x58] sm:$0xff]
    %v66 = vld [vmem:[%s1 + $0x60] sm:$0xff]
    %v67 = vld [vmem:[%s1 + $0x68] sm:$0xff]
    %v68 = vld [vmem:[%s1 + $0x70] sm:$0xff]
    %v69 = vld [vmem:[%s1 + $0x78] sm:$0xff]
    %v70 = vld [vmem:[%s2] sm:$0xff]
    %v71 = vld [vmem:[%s2 + $0x8] sm:$0xff]
    %v72 = vld [vmem:[%s2 + $0x10] sm:$0xff]
    %v73 = vld [vmem:[%s2 + $0x18] sm:$0xff]
    %vm74 = vcmask 261120
    %v76 = vsel %vm74, %v54, 0
    %v79 = vsel %vm74, %v55, 0
    %v82 = vsel %vm74, %v56, 0
    %v85 = vsel %vm74, %v57, 0
    %v88 = vsel %vm74, %v58, 0
    %v91 = vsel %vm74, %v59, 0
    %v94 = vsel %vm74, %v60, 0
    %v97 = vsel %vm74, %v61, 0
    %v100 = vsel %vm74, %v62, 0
    %v103 = vsel %vm74, %v63, 0
    %v106 = vsel %vm74, %v64, 0
    %v109 = vsel %vm74, %v65, 0
    %v112 = vsel %vm74, %v66, 0
    %v115 = vsel %vm74, %v67, 0
    %v118 = vsel %vm74, %v68, 0
    %v121 = vsel %vm74, %v69, 0
    %123 = vmatpush.msra.mxu0 0.0
    %124 = vmatpush.msra.mxu0 0.0
    %125 = vmatpush.msra.mxu0 0.0
    %126 = vmatpush.msra.mxu0 0.0
    %127 = vmatpush.msra.mxu0 0.0
    %128 = vmatpush.msra.mxu0 0.0
    %129 = vmatpush.msra.mxu0 0.0
    %130 = vmatpush.msra.mxu0 0.0
    %131 = vmatpush.msra.mxu0 0.0
    %132 = vmatpush.msra.mxu0 0.0
    %133 = vmatpush.msra.mxu0 0.0
    %134 = vmatpush.msra.mxu0 0.0
    %135 = vmatpush.msra.mxu0 %v73
    %136 = vmatpush.msra.mxu0 %v72
    %137 = vmatpush.msra.mxu0 %v71
    %138 = vmatpush.msra.mxu0 %v70
    %139 = vmatmul.f32.gmra.mxu0 %v76
    %v140 = vpop.f32.mrf.mxu0
    %v141 = vadd.f32 0.0, %v140
    %142 = vmatmul.f32.gmra.mxu0 %v79
    %v143 = vpop.f32.mrf.mxu0
    %v144 = vadd.f32 0.0, %v143
    %145 = vmatmul.f32.gmra.mxu0 %v82
    %v146 = vpop.f32.mrf.mxu0
    %v147 = vadd.f32 0.0, %v146
    %148 = vmatmul.f32.gmra.mxu0 %v85
    %v149 = vpop.f32.mrf.mxu0
    %v150 = vadd.f32 0.0, %v149
    %151 = vmatmul.f32.gmra.mxu0 %v88
    %v152 = vpop.f32.mrf.mxu0
    %v153 = vadd.f32 0.0, %v152
    %154 = vmatmul.f32.gmra.mxu0 %v91
    %v155 = vpop.f32.mrf.mxu0
    %v156 = vadd.f32 0.0, %v155
    %157 = vmatmul.f32.gmra.mxu0 %v94
    %v158 = vpop.f32.mrf.mxu0
    %v159 = vadd.f32 0.0, %v158
    %160 = vmatmul.f32.gmra.mxu0 %v97
    %v161 = vpop.f32.mrf.mxu0
    %v162 = vadd.f32 0.0, %v161
    %163 = vmatmul.f32.gmra.mxu0 %v100
    %v164 = vpop.f32.mrf.mxu0
    %v165 = vadd.f32 0.0, %v164
    %166 = vmatmul.f32.gmra.mxu0 %v103
    %v167 = vpop.f32.mrf.mxu0
    %v168 = vadd.f32 0.0, %v167
    %169 = vmatmul.f32.gmra.mxu0 %v106
    %v170 = vpop.f32.mrf.mxu0
    %v171 = vadd.f32 0.0, %v170
    %172 = vmatmul.f32.gmra.mxu0 %v109
    %v173 = vpop.f32.mrf.mxu0
    %v174 = vadd.f32 0.0, %v173
    %175 = vmatmul.f32.gmra.mxu0 %v112
    %v176 = vpop.f32.mrf.mxu0
    %v177 = vadd.f32 0.0, %v176
    %178 = vmatmul.f32.gmra.mxu0 %v115
    %v179 = vpop.f32.mrf.mxu0
    %v180 = vadd.f32 0.0, %v179
    %181 = vmatmul.f32.gmra.mxu0 %v118
    %v182 = vpop.f32.mrf.mxu0
    %v183 = vadd.f32 0.0, %v182
    %184 = vmatmul.f32.gmra.mxu0 %v121
    %v185 = vpop.f32.mrf.mxu0
    %v186 = vadd.f32 0.0, %v185
    %187 = vdwg.mxu0
    %v188 = vld [vmem:[#allocation5] sm:$0xff]
    %v189 = vld [vmem:[#allocation5 + $0x8] sm:$0xff]
    %v190 = vld [vmem:[#allocation5 + $0x10] sm:$0xff]
    %v191 = vld [vmem:[#allocation5 + $0x18] sm:$0xff]
    %v192 = vld [vmem:[#allocation5 + $0x20] sm:$0xff]
    %v193 = vld [vmem:[#allocation5 + $0x28] sm:$0xff]
    %v194 = vld [vmem:[#allocation5 + $0x30] sm:$0xff]
    %v195 = vld [vmem:[#allocation5 + $0x38] sm:$0xff]
    %v196 = vld [vmem:[#allocation5 + $0x40] sm:$0xff]
    %v197 = vld [vmem:[#allocation5 + $0x48] sm:$0xff]
    %v198 = vld [vmem:[#allocation5 + $0x50] sm:$0xff]
    %v199 = vld [vmem:[#allocation5 + $0x58] sm:$0xff]
    %v200 = vld [vmem:[#allocation5 + $0x60] sm:$0xff]
    %v201 = vld [vmem:[#allocation5 + $0x68] sm:$0xff]
    %v202 = vld [vmem:[#allocation5 + $0x70] sm:$0xff]
    %v203 = vld [vmem:[#allocation5 + $0x78] sm:$0xff]
    %v204 = vld [vmem:[%s0] sm:$0xff]
    %v205 = vld [vmem:[%s0 + $0x8] sm:$0xff]
    %v206 = vld [vmem:[%s0 + $0x10] sm:$0xff]
    %v207 = vld [vmem:[%s0 + $0x18] sm:$0xff]
    %v208 = vld [vmem:[%s0 + $0x20] sm:$0xff]
    %v209 = vld [vmem:[%s0 + $0x28] sm:$0xff]
    %v210 = vld [vmem:[%s0 + $0x30] sm:$0xff]
    %v211 = vld [vmem:[%s0 + $0x38] sm:$0xff]
    %v212 = vld [vmem:[%s0 + $0x40] sm:$0xff]
    %v213 = vld [vmem:[%s0 + $0x48] sm:$0xff]
    %v214 = vld [vmem:[%s0 + $0x50] sm:$0xff]
    %v215 = vld [vmem:[%s0 + $0x58] sm:$0xff]
    %v216 = vld [vmem:[%s0 + $0x60] sm:$0xff]
    %v217 = vld [vmem:[%s0 + $0x68] sm:$0xff]
    %v218 = vld [vmem:[%s0 + $0x70] sm:$0xff]
    %v219 = vld [vmem:[%s0 + $0x78] sm:$0xff]
    %220 = vmatpush.msra.mxu0 %v186
    %221 = vmatpush.msra.mxu0 %v183
    %222 = vmatpush.msra.mxu0 %v180
    %223 = vmatpush.msra.mxu0 %v177
    %224 = vmatpush.msra.mxu0 %v174
    %225 = vmatpush.msra.mxu0 %v171
    %226 = vmatpush.msra.mxu0 %v168
    %227 = vmatpush.msra.mxu0 %v165
    %228 = vmatpush.msra.mxu0 %v162
    %229 = vmatpush.msra.mxu0 %v159
    %230 = vmatpush.msra.mxu0 %v156
    %231 = vmatpush.msra.mxu0 %v153
    %232 = vmatpush.msra.mxu0 %v150
    %233 = vmatpush.msra.mxu0 %v147
    %234 = vmatpush.msra.mxu0 %v144
    %235 = vmatpush.msra.mxu0 %v141
    %236 = vmatmul.f32.gmra.mxu0 %v204
    %v237 = vpop.f32.mrf.mxu0
    %v238 = vadd.f32 0.0, %v237
    %239 = vmatmul.f32.gmra.mxu0 %v205
    %v240 = vpop.f32.mrf.mxu0
    %v241 = vadd.f32 0.0, %v240
    %242 = vmatmul.f32.gmra.mxu0 %v206
    %v243 = vpop.f32.mrf.mxu0
    %v244 = vadd.f32 0.0, %v243
    %245 = vmatmul.f32.gmra.mxu0 %v207
    %v246 = vpop.f32.mrf.mxu0
    %v247 = vadd.f32 0.0, %v246
    %248 = vmatmul.f32.gmra.mxu0 %v208
    %v249 = vpop.f32.mrf.mxu0
    %v250 = vadd.f32 0.0, %v249
    %251 = vmatmul.f32.gmra.mxu0 %v209
    %v252 = vpop.f32.mrf.mxu0
    %v253 = vadd.f32 0.0, %v252
    %254 = vmatmul.f32.gmra.mxu0 %v210
    %v255 = vpop.f32.mrf.mxu0
    %v256 = vadd.f32 0.0, %v255
    %257 = vmatmul.f32.gmra.mxu0 %v211
    %v258 = vpop.f32.mrf.mxu0
    %v259 = vadd.f32 0.0, %v258
    %260 = vmatmul.f32.gmra.mxu0 %v212
    %v261 = vpop.f32.mrf.mxu0
    %v262 = vadd.f32 0.0, %v261
    %263 = vmatmul.f32.gmra.mxu0 %v213
    %v264 = vpop.f32.mrf.mxu0
    %v265 = vadd.f32 0.0, %v264
    %266 = vmatmul.f32.gmra.mxu0 %v214
    %v267 = vpop.f32.mrf.mxu0
    %v268 = vadd.f32 0.0, %v267
    %269 = vmatmul.f32.gmra.mxu0 %v215
    %v270 = vpop.f32.mrf.mxu0
    %v271 = vadd.f32 0.0, %v270
    %272 = vmatmul.f32.gmra.mxu0 %v216
    %v273 = vpop.f32.mrf.mxu0
    %v274 = vadd.f32 0.0, %v273
    %275 = vmatmul.f32.gmra.mxu0 %v217
    %v276 = vpop.f32.mrf.mxu0
    %v277 = vadd.f32 0.0, %v276
    %278 = vmatmul.f32.gmra.mxu0 %v218
    %v279 = vpop.f32.mrf.mxu0
    %v280 = vadd.f32 0.0, %v279
    %281 = vmatmul.f32.gmra.mxu0 %v219
    %v282 = vpop.f32.mrf.mxu0
    %v283 = vadd.f32 0.0, %v282
    %284 = vdwg.mxu0
    %v285 = vadd.f32 %v188, %v238
    %v286 = vadd.f32 %v189, %v241
    %v287 = vadd.f32 %v190, %v244
    %v288 = vadd.f32 %v191, %v247
    %v289 = vadd.f32 %v192, %v250
    %v290 = vadd.f32 %v193, %v253
    %v291 = vadd.f32 %v194, %v256
    %v292 = vadd.f32 %v195, %v259
    %v293 = vadd.f32 %v196, %v262
    %v294 = vadd.f32 %v197, %v265
    %v295 = vadd.f32 %v198, %v268
    %v296 = vadd.f32 %v199, %v271
    %v297 = vadd.f32 %v200, %v274
    %v298 = vadd.f32 %v201, %v277
    %v299 = vadd.f32 %v202, %v280
    %v300 = vadd.f32 %v203, %v283
    %301 = vst [vmem:[#allocation5] sm:$0xff] %v285
    %302 = vst [vmem:[#allocation5 + $0x8] sm:$0xff] %v286
    %303 = vst [vmem:[#allocation5 + $0x10] sm:$0xff] %v287
    %304 = vst [vmem:[#allocation5 + $0x18] sm:$0xff] %v288
    %305 = vst [vmem:[#allocation5 + $0x20] sm:$0xff] %v289
    %306 = vst [vmem:[#allocation5 + $0x28] sm:$0xff] %v290
    %307 = vst [vmem:[#allocation5 + $0x30] sm:$0xff] %v291
    %308 = vst [vmem:[#allocation5 + $0x38] sm:$0xff] %v292
    %309 = vst [vmem:[#allocation5 + $0x40] sm:$0xff] %v293
    %310 = vst [vmem:[#allocation5 + $0x48] sm:$0xff] %v294
    %311 = vst [vmem:[#allocation5 + $0x50] sm:$0xff] %v295
    %312 = vst [vmem:[#allocation5 + $0x58] sm:$0xff] %v296
    %313 = vst [vmem:[#allocation5 + $0x60] sm:$0xff] %v297
    %314 = vst [vmem:[#allocation5 + $0x68] sm:$0xff] %v298
    %315 = vst [vmem:[#allocation5 + $0x70] sm:$0xff] %v299
    %316 = vst [vmem:[#allocation5 + $0x78] sm:$0xff] %v300
    // Predicated region
    $region26: #{tpu_custom_call.1} parent=1 // pred_check
      %p317 = pneg %p34
    $region27: #{tpu_custom_call.1} parent=1 // pred_check_branch
      %319 = sbr.rel (%p317) target = $region29
    $region28: #{tpu_custom_call.1} parent=1 // pred_region
      %v320 = vld [vmem:[#allocation5] sm:$0xff]
      %v321 = vld [vmem:[#allocation5 + $0x8] sm:$0xff]
      %v322 = vld [vmem:[#allocation5 + $0x10] sm:$0xff]
      %v323 = vld [vmem:[#allocation5 + $0x18] sm:$0xff]
      %v324 = vld [vmem:[#allocation5 + $0x20] sm:$0xff]
      %v325 = vld [vmem:[#allocation5 + $0x28] sm:$0xff]
      %v326 = vld [vmem:[#allocation5 + $0x30] sm:$0xff]
      %v327 = vld [vmem:[#allocation5 + $0x38] sm:$0xff]
      %v328 = vld [vmem:[#allocation5 + $0x40] sm:$0xff]
      %v329 = vld [vmem:[#allocation5 + $0x48] sm:$0xff]
      %v330 = vld [vmem:[#allocation5 + $0x50] sm:$0xff]
      %v331 = vld [vmem:[#allocation5 + $0x58] sm:$0xff]
      %v332 = vld [vmem:[#allocation5 + $0x60] sm:$0xff]
      %v333 = vld [vmem:[#allocation5 + $0x68] sm:$0xff]
      %v334 = vld [vmem:[#allocation5 + $0x70] sm:$0xff]
      %v335 = vld [vmem:[#allocation5 + $0x78] sm:$0xff]
      %v336 = vld [vmem:[#allocation2] sm:$0xff]
      %v337 = vld [vmem:[#allocation2 + $0x8] sm:$0xff]
      %v338 = vld [vmem:[#allocation2 + $0x10] sm:$0xff]
      %v339 = vld [vmem:[#allocation2 + $0x18] sm:$0xff]
      %v340 = vld [vmem:[#allocation2 + $0x20] sm:$0xff]
      %v341 = vld [vmem:[#allocation2 + $0x28] sm:$0xff]
      %v342 = vld [vmem:[#allocation2 + $0x30] sm:$0xff]
      %v343 = vld [vmem:[#allocation2 + $0x38] sm:$0xff]
      %v344 = vld [vmem:[#allocation2 + $0x40] sm:$0xff]
      %v345 = vld [vmem:[#allocation2 + $0x48] sm:$0xff]
      %v346 = vld [vmem:[#allocation2 + $0x50] sm:$0xff]
      %v347 = vld [vmem:[#allocation2 + $0x58] sm:$0xff]
      %v348 = vld [vmem:[#allocation2 + $0x60] sm:$0xff]
      %v349 = vld [vmem:[#allocation2 + $0x68] sm:$0xff]
      %v350 = vld [vmem:[#allocation2 + $0x70] sm:$0xff]
      %v351 = vld [vmem:[#allocation2 + $0x78] sm:$0xff]
      %v352 = vadd.f32 %v320, %v336
      %v353 = vadd.f32 %v321, %v337
      %v354 = vadd.f32 %v322, %v338
      %v355 = vadd.f32 %v323, %v339
      %v356 = vadd.f32 %v324, %v340
      %v357 = vadd.f32 %v325, %v341
      %v358 = vadd.f32 %v326, %v342
      %v359 = vadd.f32 %v327, %v343
      %v360 = vadd.f32 %v328, %v344
      %v361 = vadd.f32 %v329, %v345
      %v362 = vadd.f32 %v330, %v346
      %v363 = vadd.f32 %v331, %v347
      %v364 = vadd.f32 %v332, %v348
      %v365 = vadd.f32 %v333, %v349
      %v366 = vadd.f32 %v334, %v350
      %v367 = vadd.f32 %v335, %v351
      %v368 = vmax.f32 %v352, 0.0
      %v369 = vmax.f32 %v353, 0.0
      %v370 = vmax.f32 %v354, 0.0
      %v371 = vmax.f32 %v355, 0.0
      %v372 = vmax.f32 %v356, 0.0
      %v373 = vmax.f32 %v357, 0.0
      %v374 = vmax.f32 %v358, 0.0
      %v375 = vmax.f32 %v359, 0.0
      %v376 = vmax.f32 %v360, 0.0
      %v377 = vmax.f32 %v361, 0.0
      %v378 = vmax.f32 %v362, 0.0
      %v379 = vmax.f32 %v363, 0.0
      %v380 = vmax.f32 %v364, 0.0
      %v381 = vmax.f32 %v365, 0.0
      %v382 = vmax.f32 %v366, 0.0
      %v383 = vmax.f32 %v367, 0.0
      %384 = vst [vmem:[#allocation5] sm:$0xff] %v368
      %385 = vst [vmem:[#allocation5 + $0x8] sm:$0xff] %v369
      %386 = vst [vmem:[#allocation5 + $0x10] sm:$0xff] %v370
      %387 = vst [vmem:[#allocation5 + $0x18] sm:$0xff] %v371
      %388 = vst [vmem:[#allocation5 + $0x20] sm:$0xff] %v372
      %389 = vst [vmem:[#allocation5 + $0x28] sm:$0xff] %v373
      %390 = vst [vmem:[#allocation5 + $0x30] sm:$0xff] %v374
      %391 = vst [vmem:[#allocation5 + $0x38] sm:$0xff] %v375
      %392 = vst [vmem:[#allocation5 + $0x40] sm:$0xff] %v376
      %393 = vst [vmem:[#allocation5 + $0x48] sm:$0xff] %v377
      %394 = vst [vmem:[#allocation5 + $0x50] sm:$0xff] %v378
      %395 = vst [vmem:[#allocation5 + $0x58] sm:$0xff] %v379
      %396 = vst [vmem:[#allocation5 + $0x60] sm:$0xff] %v380
      %397 = vst [vmem:[#allocation5 + $0x68] sm:$0xff] %v381
      %398 = vst [vmem:[#allocation5 + $0x70] sm:$0xff] %v382
      %399 = vst [vmem:[#allocation5 + $0x78] sm:$0xff] %v383
    $region29: #{tpu_custom_call.1} parent=1 // pred_fallthru
      _
    // Predicated region
    $region30: #{tpu_custom_call.1} parent=1 // pred_check
      _
    $region31: #{tpu_custom_call.1} parent=1 // pred_check_branch
      %401 = sbr.rel (0) target = $region33
    $region32: #{tpu_custom_call.1} parent=1 // pred_region
      %403 = vsyncadd [#allocation4], 0
      %s404 = sshll.u32 [#allocation5], 4
      %s405 = int_to_ptr.vmem [resolvable:$true] %s404
      %s406 = sshll.u32 %s4, 4
      %s407 = int_to_ptr.hbm [resolvable:$true] %s406
      %412 = dma.vmem_to_hbm [thread:$0]  %s405, 2048, %s407, [#allocation4], 128, 128, 8
    $region33: #{tpu_custom_call.1} parent=1 // pred_fallthru
      _
    // Predicated region
    $region34: #{tpu_custom_call.1} parent=1 // pred_check
      _
    $region35: #{tpu_custom_call.1} parent=1 // pred_check_branch
      %414 = sbr.rel (0) target = $region37
    $region36: #{tpu_custom_call.1} parent=1 // pred_region
      %416 = dma.done [#allocation4], 2048
    $region37: #{tpu_custom_call.1} parent=1 // pred_fallthru
      _
    %417 = vsyncpa [#allocation3], 1
    %418 = vsyncpa [#allocation4], 1

</llo_original>
